<compile_context>
chip_gen: v5e
topology: v5e:2x2
jax: 0.10.0
libtpu: 0.0.40
codegen_flags: <defaults>
</compile_context>

<pallas_src>
import jax
import jax.numpy as jnp
from jax.experimental import pallas as pl
from jax.experimental.pallas import tpu as pltpu

LANE = 128      # TPU lane width; batch tiles are multiples of this (lane axis).
F_PAD = 8       # 4 input features padded to one f32 sublane group.
H = 32          # hidden width (exact sublane multiple).
O_PAD = 8       # 3 outputs padded to one f32 sublane group.
MAX_TB = 2048   # max batch-lanes per grid step (sweepable).


def _round_up(n: int, m: int) -> int:
    return ((n + m - 1) // m) * m


def _mlp_kernel(xt_ref, w1t_ref, b1_ref, w2t_ref, b2_ref, o_ref):
    # xt_ref : (F_PAD, TB) f32  -- x^T tile, batch on the lane axis (lane-dense)
    # w1t_ref: (H, F_PAD)  f32  -- W1^T, VMEM-resident across the grid
    # b1_ref : (H, 1)      f32
    # w2t_ref: (O_PAD, H)  f32  -- W2^T padded to 8 rows, VMEM-resident
    # b2_ref : (O_PAD, 1)  f32
    # o_ref  : (O_PAD, TB) f32  -- y^T tile, lane-dense unmasked stores
    h = jnp.dot(w1t_ref[...], xt_ref[...],
                preferred_element_type=jnp.float32)        # (H, TB) f32 MXU
    h = jnp.maximum(h + b1_ref[...], 0.0)                  # bias + ReLU, f32 VPU
    y = jnp.dot(w2t_ref[...], h,
                preferred_element_type=jnp.float32)        # (O_PAD, TB) f32 MXU
    o_ref[...] = y + b2_ref[...]


def prepare_params(w1, b1, w2, b2):
    """One-time packing of the Linear params into kernel-ready slabs.

    w1: (4, 32), b1: (32,), w2: (32, 3), b2: (3,) -- stored as (in, out).
    Zero padding is numerically exact: padded feature rows of x^T multiply
    zero columns of W1^T, padded output rows of W2^T/b2 are sliced off.
    """
    f32 = jnp.float32
    w1t = jnp.zeros((H, F_PAD), f32).at[:, :4].set(w1.astype(f32).T)   # (32, 8)
    b1c = b1.astype(f32).reshape(H, 1)                                 # (32, 1)
    w2t = jnp.zeros((O_PAD, H), f32).at[:3, :].set(w2.astype(f32).T)   # (8, 32)
    b2c = jnp.zeros((O_PAD, 1), f32).at[:3, 0].set(b2.astype(f32))     # (8, 1)
    return w1t, b1c, w2t, b2c


def iris_mlp_forward(x, w1t, b1c, w2t, b2c):
    """x: (B, 4) f32; packed params from prepare_params(). Returns (B, 3) f32."""
    B, F = x.shape  # F == 4

    # Batch tiling on the lane axis.  Aim for >=2 grid steps once the batch
    # spans more than one 128-lane tile (v7x megacore sharding of the
    # "parallel" axis); cap the tile so per-step VMEM stays tiny.
    n_lane_tiles = _round_up(B, LANE) // LANE
    TB = min(MAX_TB, LANE * max(1, -(-n_lane_tiles // 2)))
    B_pad = _round_up(B, TB)
    grid = (B_pad // TB,)

    # x^T zero-padded to (F_PAD, B_pad): the only per-call prep pass, writing
    # 32 B/sample of real (lane-dense) data.
    xt = jnp.zeros((F_PAD, B_pad), jnp.float32).at[:F, :B].set(
        x.astype(jnp.float32).T)

    cost = pl.CostEstimate(
        flops=2 * B_pad * (F_PAD * H + H * O_PAD),
        transcendentals=0,
        bytes_accessed=4 * (xt.size + O_PAD * B_pad
                            + w1t.size + b1c.size + w2t.size + b2c.size),
    )

    out_t = pl.pallas_call(
        _mlp_kernel,
        out_shape=jax.ShapeDtypeStruct((O_PAD, B_pad), jnp.float32),
        grid=grid,
        in_specs=[
            pl.BlockSpec((F_PAD, TB), lambda i: (0, i)),   # x^T streams over batch
            pl.BlockSpec((H, F_PAD), lambda i: (0, 0)),    # W1^T resident
            pl.BlockSpec((H, 1), lambda i: (0, 0)),        # b1 resident
            pl.BlockSpec((O_PAD, H), lambda i: (0, 0)),    # W2^T resident
            pl.BlockSpec((O_PAD, 1), lambda i: (0, 0)),    # b2 resident
        ],
        out_specs=pl.BlockSpec((O_PAD, TB), lambda i: (0, i)),
        compiler_params=pltpu.CompilerParams(
            dimension_semantics=("parallel",)),            # megacore on v7x
        cost_estimate=cost,
    )(xt, w1t, b1c, w2t, b2c)

    # Slice the 3 real output rows / B real batch lanes and restore (B, 3).
    return out_t[:3, :B].T


def init_params(key):
    """Deterministic init mirroring nn.Linear default (U(-1/sqrt(fan_in), +))."""
    k1, k2, k3, k4 = jax.random.split(key, 4)
    bound1 = 1.0 / jnp.sqrt(4.0)
    bound2 = 1.0 / jnp.sqrt(32.0)
    # Stored already transposed to (in, out) for x @ W semantics.
    w1 = jax.random.uniform(k1, (4, 32), jnp.float32, -bound1, bound1)
    b1 = jax.random.uniform(k2, (32,), jnp.float32, -bound1, bound1)
    w2 = jax.random.uniform(k3, (32, 3), jnp.float32, -bound2, bound2)
    b2 = jax.random.uniform(k4, (3,), jnp.float32, -bound2, bound2)
    return w1, b1, w2, b2


if __name__ == "__main__":
    key = jax.random.PRNGKey(0)
    k_x, k_p = jax.random.split(key)

    batch = 8
    x = jax.random.normal(k_x, (batch, 4), jnp.float32)   # iris: 4 features
    w1, b1, w2, b2 = init_params(k_p)

    # One-time param packing, hoisted out of the per-call path (perf review #4).
    w1t, b1c, w2t, b2c = prepare_params(w1, b1, w2, b2)

    forward = jax.jit(iris_mlp_forward)
    out = forward(x, w1t, b1c, w2t, b2c)
    out = jax.block_until_ready(out)

    # Reference: full-precision f32 path (kernel is f32 end-to-end, so it
    # matches closely; tolerance only covers MXU f32-pass rounding).
    h_ref = jnp.maximum(jnp.dot(x, w1, precision="highest") + b1, 0.0)
    ref = jnp.dot(h_ref, w2, precision="highest") + b2
    assert out.shape == (batch, 3)
    assert jnp.allclose(out, ref, atol=1e-2, rtol=1e-2), (
        f"max abs err {jnp.max(jnp.abs(out - ref))}")

    print("KERNEL_OK")
</pallas_src>

<mosaic_0001>
module attributes {stable_mosaic.version = 11 : i64} {
  func.func @_mlp_kernel(%arg0: i32, %arg1: memref<8x128xf32, #tpu.memory_space<vmem>>, %arg2: memref<32x8xf32, #tpu.memory_space<vmem>>, %arg3: memref<32x1xf32, #tpu.memory_space<vmem>>, %arg4: memref<8x32xf32, #tpu.memory_space<vmem>>, %arg5: memref<8x1xf32, #tpu.memory_space<vmem>>, %arg6: memref<8x128xf32, #tpu.memory_space<vmem>>) attributes {dimension_semantics = [#tpu.dimension_semantics<parallel>], iteration_bounds = array<i64: 1>, scalar_prefetch = 0 : i64, scratch_operands = 0 : i64, tpu.core_type = #tpu.core_type<tc>, window_params = [{transform_indices = @transform_0, window_bounds = array<i64: 8, 128>}, {pipeline_mode = #tpu.pipeline_mode<synchronous>, transform_indices = @transform_1, window_bounds = array<i64: 32, 8>}, {pipeline_mode = #tpu.pipeline_mode<synchronous>, transform_indices = @transform_2, window_bounds = array<i64: 32, 1>}, {pipeline_mode = #tpu.pipeline_mode<synchronous>, transform_indices = @transform_3, window_bounds = array<i64: 8, 32>}, {pipeline_mode = #tpu.pipeline_mode<synchronous>, transform_indices = @transform_4, window_bounds = array<i64: 8, 1>}, {transform_indices = @transform_5, window_bounds = array<i64: 8, 128>}]} {
    %c0 = arith.constant 0 : index
    %c0_0 = arith.constant 0 : index
    %0 = vector.load %arg2[%c0, %c0_0] : memref<32x8xf32, #tpu.memory_space<vmem>>, vector<32x8xf32>
    %c0_1 = arith.constant 0 : index
    %c0_2 = arith.constant 0 : index
    %1 = vector.load %arg1[%c0_1, %c0_2] : memref<8x128xf32, #tpu.memory_space<vmem>>, vector<8x128xf32>
    %cst = arith.constant dense<0.000000e+00> : vector<32x128xf32>
    %2 = tpu.matmul %0, %1, %cst {dimension_numbers = #tpu.dot_dimension_numbers<[1], [0], [0], [1], [0, 0, 1, 1], [], []>} : vector<32x8xf32>, vector<8x128xf32>, vector<32x128xf32> -> vector<32x128xf32>
    %c0_3 = arith.constant 0 : index
    %c0_4 = arith.constant 0 : index
    %3 = vector.load %arg3[%c0_3, %c0_4] : memref<32x1xf32, #tpu.memory_space<vmem>>, vector<32x1xf32>
    %4 = vector.broadcast %3 : vector<32x1xf32> to vector<32x128xf32>
    %5 = arith.addf %2, %4 : vector<32x128xf32>
    %cst_5 = arith.constant 0.000000e+00 : f32
    %6 = vector.broadcast %cst_5 : f32 to vector<32x128xf32>
    %7 = arith.maximumf %5, %6 : vector<32x128xf32>
    %c0_6 = arith.constant 0 : index
    %c0_7 = arith.constant 0 : index
    %8 = vector.load %arg4[%c0_6, %c0_7] : memref<8x32xf32, #tpu.memory_space<vmem>>, vector<8x32xf32>
    %cst_8 = arith.constant dense<0.000000e+00> : vector<8x128xf32>
    %9 = tpu.matmul %8, %7, %cst_8 {dimension_numbers = #tpu.dot_dimension_numbers<[1], [0], [0], [1], [0, 0, 1, 1], [], []>} : vector<8x32xf32>, vector<32x128xf32>, vector<8x128xf32> -> vector<8x128xf32>
    %c0_9 = arith.constant 0 : index
    %c0_10 = arith.constant 0 : index
    %10 = vector.load %arg5[%c0_9, %c0_10] : memref<8x1xf32, #tpu.memory_space<vmem>>, vector<8x1xf32>
    %11 = vector.broadcast %10 : vector<8x1xf32> to vector<8x128xf32>
    %12 = arith.addf %9, %11 : vector<8x128xf32>
    %c0_11 = arith.constant 0 : index
    %c0_12 = arith.constant 0 : index
    %13 = vector.load %arg6[%c0_11, %c0_12] : memref<8x128xf32, #tpu.memory_space<vmem>>, vector<8x128xf32>
    tpu.vector_store %arg6[%c0_11, %c0_12], %12 {strides = array<i32>} : memref<8x128xf32, #tpu.memory_space<vmem>>, vector<8x128xf32>,
    return
  }
  func.func @transform_0(%arg0: i32) -> (i32, i32) {
    %c0_i32 = arith.constant 0 : i32
    %c0_i32_0 = arith.constant 0 : i32
    return %c0_i32, %arg0 : i32, i32
  }
  func.func @transform_1(%arg0: i32) -> (i32, i32) {
    %c0_i32 = arith.constant 0 : i32
    %c0_i32_0 = arith.constant 0 : i32
    %c0_i32_1 = arith.constant 0 : i32
    return %c0_i32, %c0_i32_0 : i32, i32
  }
  func.func @transform_2(%arg0: i32) -> (i32, i32) {
    %c0_i32 = arith.constant 0 : i32
    %c0_i32_0 = arith.constant 0 : i32
    %c0_i32_1 = arith.constant 0 : i32
    return %c0_i32, %c0_i32_0 : i32, i32
  }
  func.func @transform_3(%arg0: i32) -> (i32, i32) {
    %c0_i32 = arith.constant 0 : i32
    %c0_i32_0 = arith.constant 0 : i32
    %c0_i32_1 = arith.constant 0 : i32
    return %c0_i32, %c0_i32_0 : i32, i32
  }
  func.func @transform_4(%arg0: i32) -> (i32, i32) {
    %c0_i32 = arith.constant 0 : i32
    %c0_i32_0 = arith.constant 0 : i32
    %c0_i32_1 = arith.constant 0 : i32
    return %c0_i32, %c0_i32_0 : i32, i32
  }
  func.func @transform_5(%arg0: i32) -> (i32, i32) {
    %c0_i32 = arith.constant 0 : i32
    %c0_i32_0 = arith.constant 0 : i32
    return %c0_i32, %arg0 : i32, i32
  }
}

</mosaic_0001>

<llo_original>
// kernel: iris_mlp_forward.1
$region0: #{iris_mlp_forward.1}
  #allocation0 [shape = 'u32[]', space=smem, size = 0x4, offset = 0x4, fixed_abs, tag = 'smem constant byte address 0x4 - core index']
  #allocation1 [shape = 'u32[72,128]{1,0:T(1,128)}', space=vmem, size = 0x9000, scoped, tag = 'internal scratch']
  %s0 = inlined_call_operand.vmem [shape: f32[8,128], index: 0, kind: input, shape index: {}]
  %s1 = inlined_call_operand.vmem [shape: f32[32,8], index: 1, kind: input, shape index: {}]
  %s2 = inlined_call_operand.vmem [shape: f32[32,1], index: 2, kind: input, shape index: {}]
  %s3 = inlined_call_operand.vmem [shape: f32[8,32], index: 3, kind: input, shape index: {}]
  %s4 = inlined_call_operand.vmem [shape: f32[8,1], index: 4, kind: input, shape index: {}]
  %s5 = inlined_call_operand.vmem [shape: f32[8,128], index: 5, kind: output, shape index: {}]
  %s6 = sld [smem:[#allocation0]]
  $region30: #{iris_mlp_forward.1} parent=0
    _
  %s8 = ssub.s32 1, %s6
  %s9 = scalar_select 0, %s8, %s6
  // Predicated region
  $region2: #{iris_mlp_forward.1} parent=0 // pred_check
    _
  $region3: #{iris_mlp_forward.1} parent=0 // pred_check_branch
    %11 = sbr.rel (0) target = $region5
  $region4: #{iris_mlp_forward.1} parent=0 // pred_region
    _
  $region5: #{iris_mlp_forward.1} parent=0 // pred_fallthru
    _
  // Predicated region
  $region6: #{iris_mlp_forward.1} parent=0 // pred_check
    _
  $region7: #{iris_mlp_forward.1} parent=0 // pred_check_branch
    %13 = sbr.rel (0) target = $region9
  $region8: #{iris_mlp_forward.1} parent=0 // pred_region
    _
  $region9: #{iris_mlp_forward.1} parent=0 // pred_fallthru
    _
  // Predicated region
  $region10: #{iris_mlp_forward.1} parent=0 // pred_check
    _
  $region11: #{iris_mlp_forward.1} parent=0 // pred_check_branch
    %15 = sbr.rel (0) target = $region13
  $region12: #{iris_mlp_forward.1} parent=0 // pred_region
    _
  $region13: #{iris_mlp_forward.1} parent=0 // pred_fallthru
    _
  // Predicated region
  $region14: #{iris_mlp_forward.1} parent=0 // pred_check
    _
  $region15: #{iris_mlp_forward.1} parent=0 // pred_check_branch
    %17 = sbr.rel (0) target = $region17
  $region16: #{iris_mlp_forward.1} parent=0 // pred_region
    _
  $region17: #{iris_mlp_forward.1} parent=0 // pred_fallthru
    _
  // Predicated region
  $region18: #{iris_mlp_forward.1} parent=0 // pred_check
    _
  $region19: #{iris_mlp_forward.1} parent=0 // pred_check_branch
    %19 = sbr.rel (0) target = $region21
  $region20: #{iris_mlp_forward.1} parent=0 // pred_region
    _
  $region21: #{iris_mlp_forward.1} parent=0 // pred_fallthru
    _
  %v20 = vld [vmem:[%s1] sm:$0xff]
  %v21 = vld [vmem:[%s1 + $0x8] sm:$0xff]
  %v22 = vld [vmem:[%s1 + $0x10] sm:$0xff]
  %v23 = vld [vmem:[%s1 + $0x18] sm:$0xff]
  %v24 = vld [vmem:[%s0] sm:$0xff]
  %v25 = vld [vmem:[%s2] sm:$0xff]
  %v26 = vld [vmem:[%s2 + $0x8] sm:$0xff]
  %v27 = vld [vmem:[%s2 + $0x10] sm:$0xff]
  %v28 = vld [vmem:[%s2 + $0x18] sm:$0xff]
  %30 = vset.pattern.permute.xlu0 0
  %31 = vperm.xlu0 %30, %v25
  %v32 = vpop.permute.xlu0 %31
  %35 = vset.pattern.permute.xlu0 0
  %36 = vperm.xlu0 %35, %v26
  %v37 = vpop.permute.xlu0 %36
  %40 = vset.pattern.permute.xlu0 0
  %41 = vperm.xlu0 %40, %v27
  %v42 = vpop.permute.xlu0 %41
  %45 = vset.pattern.permute.xlu0 0
  %46 = vperm.xlu0 %45, %v28
  %v47 = vpop.permute.xlu0 %46
  %vm49 = vcmask 64512
  %v51 = vsel %vm49, %v20, 0
  %v54 = vsel %vm49, %v21, 0
  %v57 = vsel %vm49, %v22, 0
  %v60 = vsel %vm49, %v23, 0
  %62 = vmatpush.msra.mxu0 0.0
  %63 = vmatpush.msra.mxu0 0.0
  %64 = vmatpush.msra.mxu0 0.0
  %65 = vmatpush.msra.mxu0 0.0
  %66 = vmatpush.msra.mxu0 0.0
  %67 = vmatpush.msra.mxu0 0.0
  %68 = vmatpush.msra.mxu0 0.0
  %69 = vmatpush.msra.mxu0 0.0
  %70 = vmatpush.msra.mxu0 0.0
  %71 = vmatpush.msra.mxu0 0.0
  %72 = vmatpush.msra.mxu0 0.0
  %73 = vmatpush.msra.mxu0 0.0
  %74 = vmatpush.msra.mxu0 0.0
  %75 = vmatpush.msra.mxu0 0.0
  %76 = vmatpush.msra.mxu0 0.0
  %77 = vmatpush.msra.mxu0 %v24
  %78 = vmatmul.f32.gmra.mxu0 %v51
  %v79 = vpop.f32.mrf.mxu0
  %v80 = vadd.f32 %v32, %v79
  %81 = vmatmul.f32.gmra.mxu0 %v54
  %v82 = vpop.f32.mrf.mxu0
  %v83 = vadd.f32 %v37, %v82
  %84 = vmatmul.f32.gmra.mxu0 %v57
  %v85 = vpop.f32.mrf.mxu0
  %v86 = vadd.f32 %v42, %v85
  %87 = vmatmul.f32.gmra.mxu0 %v60
  %v88 = vpop.f32.mrf.mxu0
  %v89 = vadd.f32 %v47, %v88
  %90 = vdwg.mxu0
  %v91 = vmax.f32 %v80, 0.0
  %v92 = vmax.f32 %v83, 0.0
  %v93 = vmax.f32 %v86, 0.0
  %v94 = vmax.f32 %v89, 0.0
  %v95 = vld [vmem:[%s3] sm:$0xff]
  %v96 = vld [vmem:[%s4] sm:$0xff]
  %98 = vset.pattern.permute.xlu0 0
  %99 = vperm.xlu0 %98, %v96
  %v100 = vpop.permute.xlu0 %99
  %vm102 = vcmask 261120
  %v104 = vsel %vm102, %v95, 0
  %106 = vmatpush.msra.mxu0 0.0
  %107 = vmatpush.msra.mxu0 0.0
  %108 = vmatpush.msra.mxu0 0.0
  %109 = vmatpush.msra.mxu0 0.0
  %110 = vmatpush.msra.mxu0 0.0
  %111 = vmatpush.msra.mxu0 0.0
  %112 = vmatpush.msra.mxu0 0.0
  %113 = vmatpush.msra.mxu0 0.0
  %114 = vmatpush.msra.mxu0 0.0
  %115 = vmatpush.msra.mxu0 0.0
  %116 = vmatpush.msra.mxu0 0.0
  %117 = vmatpush.msra.mxu0 0.0
  %118 = vmatpush.msra.mxu0 %v94
  %119 = vmatpush.msra.mxu0 %v93
  %120 = vmatpush.msra.mxu0 %v92
  %121 = vmatpush.msra.mxu0 %v91
  %122 = vmatmul.f32.gmra.mxu0 %v104
  %v123 = vpop.f32.mrf.mxu0
  %v124 = vadd.f32 %v100, %v123
  %125 = vdwg.mxu0
  %126 = vst [vmem:[%s5] sm:$0xff] %v124
  // Predicated region
  $region22: #{iris_mlp_forward.1} parent=0 // pred_check
    _
  $region23: #{iris_mlp_forward.1} parent=0 // pred_check_branch
    %128 = sbr.rel (0) target = $region25
  $region24: #{iris_mlp_forward.1} parent=0 // pred_region
    _
  $region25: #{iris_mlp_forward.1} parent=0 // pred_fallthru
    _
  // Predicated region
  $region26: #{iris_mlp_forward.1} parent=0 // pred_check
    _
  $region27: #{iris_mlp_forward.1} parent=0 // pred_check_branch
    %130 = sbr.rel (0) target = $region29
  $region28: #{iris_mlp_forward.1} parent=0 // pred_region
    _
  $region29: #{iris_mlp_forward.1} parent=0 // pred_fallthru
    _

</llo_original>
